<compile_context>
chip_gen: v7x
topology: tpu7x:2x2x1
jax: 0.10.0
libtpu: 0.0.40
codegen_flags: <defaults>
</compile_context>

<pallas_src>
import functools

import jax
import jax.numpy as jnp
from jax.experimental import pallas as pl
from jax.experimental.pallas import tpu as pltpu

_LANE = 128


def _round_up(x, m):
    return (x + m - 1) // m * m


def _decoder2step_kernel(emb_ref, w_ref, mq_ref, diag_ref, out_ref, *, pf, ph, pu):
    """Single invocation (no grid). All slices are 128-lane aligned."""
    emb = emb_ref[...]                                         # (B, E+1) f32

    # One fused MXU pass for every head: [ F | h | u_p expansion | u_q expansion ].
    y = jnp.dot(emb, w_ref[...], preferred_element_type=jnp.float32)   # (B, pf+ph+2*pu)

    f_blk = y[:, :pf]                                          # (B, pf)  F head (zero-padded)
    h_raw = y[:, pf:pf + ph]                                   # (B, ph)  h logits (-1e9 padded)
    u_p = y[:, pf + ph:pf + ph + pu]                           # (B, pu)  emb_aug[b, lane // Ea]
    u_q = y[:, pf + ph + pu:pf + ph + 2 * pu]                  # (B, pu)  emb_aug[b, lane %  Ea]

    # ---- C head: quadratic form, produced directly in flat (B, N*N) layout ----
    u2 = u_p * u_q                                             # (B, pu): u ⊗ u, flattened
    cdot = jnp.dot(u2, mq_ref[...], preferred_element_type=jnp.float32)  # (B, pc)
    csig = jax.nn.sigmoid(cdot)
    diag = diag_ref[...]                                       # (1, pc) 0/1 diagonal mask
    c_blk = csig * (1.0 - diag) + diag                         # exact 1.0 on the diagonal

    # ---- h head: softmax over the N real lanes (pad lanes carry -1e9 bias) ----
    m = jnp.max(h_raw, axis=1, keepdims=True)
    e = jnp.exp(h_raw - m)                                     # padding lanes underflow to 0
    s = jnp.sum(e, axis=1, keepdims=True)
    inv = pl.reciprocal(s, approx=True)                        # EUP vrcp
    inv = inv * (2.0 - s * inv)                                # Newton step 1
    inv = inv * (2.0 - s * inv)                                # Newton step 2 (~f32-exact)
    h_blk = e * inv

    # Single lane-dense unmasked store (total width is a multiple of 128,
    # every concatenated block is vreg-aligned).
    out_ref[...] = jnp.concatenate([f_blk, h_blk, c_blk], axis=1)


def prepare_decoder2step_params(params, *, embedding_channels, N_max,
                                nodes_channels, edge_embedding_channels):
    """One-time fusion / 128-padding of the decoder weights (hoisted out of the call path)."""
    E, N, nc, de = embedding_channels, N_max, nodes_channels, edge_embedding_channels
    ea = E + 1                          # +1: bias folded via an appended ones column
    pf = _round_up(N * nc, _LANE)       # F block width
    ph = _round_up(N, _LANE)            # h block width
    pu = _round_up(ea * ea, _LANE)      # u ⊗ u block width
    pc = _round_up(N * N, _LANE)        # C block width

    f32 = jnp.float32
    w_f = jnp.concatenate([params["W_F"], params["b_F"]], axis=0).astype(f32)   # (ea, N*nc)
    w_h = jnp.concatenate([params["W_h"], params["b_h"]], axis=0).astype(f32)   # (ea, N)
    w_c = jnp.concatenate([params["W_C"], params["b_C"]], axis=0).astype(f32)   # (ea, N*de)

    # 0/1 lane-expansion matrices:  (emb_aug @ r_p)[b, p*ea+q] = emb_aug[b, p]
    #                               (emb_aug @ r_q)[b, p*ea+q] = emb_aug[b, q]
    rows = jnp.arange(ea)[:, None]
    lanes = jnp.arange(pu)[None, :]
    valid = lanes < ea * ea
    r_p = ((lanes // ea == rows) & valid).astype(f32)           # (ea, pu)
    r_q = ((lanes % ea == rows) & valid).astype(f32)            # (ea, pu)

    w_big = jnp.zeros((ea, pf + ph + 2 * pu), f32)
    w_big = w_big.at[:, :N * nc].set(w_f)
    w_big = w_big.at[:, pf:pf + N].set(w_h)
    # Kill the softmax padding lanes via the folded bias row (ones column is last).
    w_big = w_big.at[ea - 1, pf + N:pf + ph].set(-1e9)
    w_big = w_big.at[:, pf + ph:pf + ph + pu].set(r_p)
    w_big = w_big.at[:, pf + ph + pu:].set(r_q)

    # Quadratic-form weight for the C head:
    #   M[p*ea+q, k*N+l] = sum_d Wc_aug[p, k, d] * Wc_aug[q, l, d]
    wc3 = w_c.reshape(ea, N, de)
    mten = jnp.einsum('pkd,qld->pqkl', wc3, wc3)
    m_q = jnp.zeros((pu, pc), f32)
    m_q = m_q.at[:ea * ea, :N * N].set(mten.reshape(ea * ea, N * N))

    cols = jnp.arange(pc)
    diag = (((cols % (N + 1)) == 0) & (cols < N * N)).astype(f32).reshape(1, pc)

    return {"w_big": w_big, "m_q": m_q, "diag": diag,
            "dims": (E, N, nc, de, pf, ph, pu, pc)}


def decoder2step_pallas(embedding, prepared):
    E, N, nc, de, pf, ph, pu, pc = prepared["dims"]
    B = embedding.shape[0]
    # Bias folding: append a ones column (layout plumbing, endorsed by review).
    emb_aug = jnp.concatenate(
        [embedding.astype(jnp.float32), jnp.ones((B, 1), jnp.float32)], axis=1)

    kernel = functools.partial(_decoder2step_kernel, pf=pf, ph=ph, pu=pu)
    vmem = pl.BlockSpec(memory_space=pltpu.MemorySpace.VMEM)

    out = pl.pallas_call(
        kernel,
        out_shape=jax.ShapeDtypeStruct((B, pf + ph + pc), jnp.float32),
        in_specs=[vmem, vmem, vmem, vmem],
        out_specs=vmem,
    )(emb_aug, prepared["w_big"], prepared["m_q"], prepared["diag"])

    # Reshape/slice outside the kernel: free layout plumbing, keeps the
    # in-kernel store a single lane-dense vst.
    F = out[:, :N * nc].reshape(B, N, nc)
    h = out[:, pf:pf + N]
    C = out[:, pf + ph:pf + ph + N * N].reshape(B, N, N)
    return F, C, h


def decoder2step_ref(embedding, params, *, N_max, nodes_channels, edge_embedding_channels):
    """Pure-JAX reference mirroring the PyTorch forward."""
    B = embedding.shape[0]
    N, nc, de = N_max, nodes_channels, edge_embedding_channels
    F = (embedding @ params["W_F"] + params["b_F"]).reshape(B, N, nc)
    x = (embedding @ params["W_C"] + params["b_C"]).reshape(B, N, de)
    dot = jnp.einsum('bkd,bld->bkl', x, x)
    C = jax.nn.sigmoid(dot)
    eye = jnp.eye(N, dtype=jnp.float32)
    C = C * (1.0 - eye)[None] + eye[None]
    h = embedding @ params["W_h"] + params["b_h"]
    h = jax.nn.softmax(h, axis=1)
    return F, C, h


def make_params(key, *, embedding_channels, N_max, nodes_channels, edge_embedding_channels):
    E, N, nc, de = embedding_channels, N_max, nodes_channels, edge_embedding_channels
    ks = jax.random.split(key, 6)
    scale = 0.1
    return {
        "W_F": scale * jax.random.normal(ks[0], (E, N * nc), jnp.float32),
        "b_F": scale * jax.random.normal(ks[1], (1, N * nc), jnp.float32),
        "W_C": scale * jax.random.normal(ks[2], (E, N * de), jnp.float32),
        "b_C": scale * jax.random.normal(ks[3], (1, N * de), jnp.float32),
        "W_h": scale * jax.random.normal(ks[4], (E, N), jnp.float32),
        "b_h": scale * jax.random.normal(ks[5], (1, N), jnp.float32),
    }


if __name__ == "__main__":
    # Module defaults: nodes_channels=2, embedding_channels=10, N_max=20,
    # edge_embedding_channels=5, num_layers=1.
    B = 4
    embedding_channels = 10
    N_max = 20
    nodes_channels = 2
    edge_embedding_channels = 5

    key = jax.random.PRNGKey(0)
    k_emb, k_par = jax.random.split(key)
    embedding = jax.random.normal(k_emb, (B, embedding_channels), jnp.float32)
    params = make_params(
        k_par,
        embedding_channels=embedding_channels,
        N_max=N_max,
        nodes_channels=nodes_channels,
        edge_embedding_channels=edge_embedding_channels,
    )

    # One-time weight fusion (hoisted out of the per-call path).
    prepared = prepare_decoder2step_params(
        params,
        embedding_channels=embedding_channels,
        N_max=N_max,
        nodes_channels=nodes_channels,
        edge_embedding_channels=edge_embedding_channels,
    )

    F_k, C_k, h_k = decoder2step_pallas(embedding, prepared)
    jax.block_until_ready((F_k, C_k, h_k))

    F_r, C_r, h_r = decoder2step_ref(
        embedding, params,
        N_max=N_max, nodes_channels=nodes_channels,
        edge_embedding_channels=edge_embedding_channels,
    )

    assert F_k.shape == (B, N_max, nodes_channels)
    assert C_k.shape == (B, N_max, N_max)
    assert h_k.shape == (B, N_max)
    assert jnp.allclose(F_k, F_r, atol=5e-5, rtol=5e-5)
    assert jnp.allclose(C_k, C_r, atol=5e-5, rtol=5e-5)
    assert jnp.allclose(h_k, h_r, atol=5e-5, rtol=5e-5)

    print("KERNEL_OK")
</pallas_src>

<mosaic_0001>
module attributes {stable_mosaic.version = 11 : i64} {
  func.func @_decoder2step_kernel(%arg0: memref<4x11xf32, #tpu.memory_space<vmem>>, %arg1: memref<11x512xf32, #tpu.memory_space<vmem>>, %arg2: memref<128x512xf32, #tpu.memory_space<vmem>>, %arg3: memref<1x512xf32, #tpu.memory_space<vmem>>, %arg4: memref<4x768xf32, #tpu.memory_space<vmem>>) attributes {dimension_semantics = [], scalar_prefetch = 0 : i64, scratch_operands = 0 : i64, tpu.core_type = #tpu.core_type<tc>} {
    %c0 = arith.constant 0 : index
    %c0_0 = arith.constant 0 : index
    %0 = vector.load %arg0[%c0, %c0_0] : memref<4x11xf32, #tpu.memory_space<vmem>>, vector<4x11xf32>
    %c0_1 = arith.constant 0 : index
    %c0_2 = arith.constant 0 : index
    %1 = vector.load %arg1[%c0_1, %c0_2] : memref<11x512xf32, #tpu.memory_space<vmem>>, vector<11x512xf32>
    %cst = arith.constant dense<0.000000e+00> : vector<4x512xf32>
    %2 = tpu.matmul %0, %1, %cst {dimension_numbers = #tpu.dot_dimension_numbers<[1], [0], [0], [1], [0, 0, 1, 1], [], []>} : vector<4x11xf32>, vector<11x512xf32>, vector<4x512xf32> -> vector<4x512xf32>
    %3 = vector.extract_strided_slice %2 {offsets = [0, 0], sizes = [4, 128], strides = [1, 1]} : vector<4x512xf32> to vector<4x128xf32>
    %4 = vector.extract_strided_slice %2 {offsets = [0, 128], sizes = [4, 128], strides = [1, 1]} : vector<4x512xf32> to vector<4x128xf32>
    %5 = vector.extract_strided_slice %2 {offsets = [0, 256], sizes = [4, 128], strides = [1, 1]} : vector<4x512xf32> to vector<4x128xf32>
    %6 = vector.extract_strided_slice %2 {offsets = [0, 384], sizes = [4, 128], strides = [1, 1]} : vector<4x512xf32> to vector<4x128xf32>
    %7 = arith.mulf %5, %6 : vector<4x128xf32>
    %c0_3 = arith.constant 0 : index
    %c0_4 = arith.constant 0 : index
    %8 = vector.load %arg2[%c0_3, %c0_4] : memref<128x512xf32, #tpu.memory_space<vmem>>, vector<128x512xf32>
    %cst_5 = arith.constant dense<0.000000e+00> : vector<4x512xf32>
    %9 = tpu.matmul %7, %8, %cst_5 {dimension_numbers = #tpu.dot_dimension_numbers<[1], [0], [0], [1], [0, 0, 1, 1], [], []>} : vector<4x128xf32>, vector<128x512xf32>, vector<4x512xf32> -> vector<4x512xf32>
    %10 = arith.negf %9 : vector<4x512xf32>
    %11 = math.exp %10 : vector<4x512xf32>
    %cst_6 = arith.constant 1.000000e+00 : f32
    %12 = vector.broadcast %cst_6 : f32 to vector<4x512xf32>
    %13 = arith.addf %12, %11 : vector<4x512xf32>
    %14 = arith.divf %12, %13 : vector<4x512xf32>
    %c0_7 = arith.constant 0 : index
    %c0_8 = arith.constant 0 : index
    %15 = vector.load %arg3[%c0_7, %c0_8] : memref<1x512xf32, #tpu.memory_space<vmem>>, vector<1x512xf32>
    %cst_9 = arith.constant 1.000000e+00 : f32
    %16 = vector.broadcast %cst_9 : f32 to vector<1x512xf32>
    %17 = arith.subf %16, %15 : vector<1x512xf32>
    %18 = vector.broadcast %17 : vector<1x512xf32> to vector<4x512xf32>
    %19 = arith.mulf %14, %18 : vector<4x512xf32>
    %20 = vector.broadcast %15 : vector<1x512xf32> to vector<4x512xf32>
    %21 = arith.addf %19, %20 : vector<4x512xf32>
    %cst_10 = arith.constant dense<0xFF800000> : vector<4xf32>
    %22 = vector.multi_reduction <maximumf>, %4, %cst_10 [1] : vector<4x128xf32> to vector<4xf32>
    %23 = vector.shape_cast %22 : vector<4xf32> to vector<4x1xf32>
    %24 = vector.broadcast %23 : vector<4x1xf32> to vector<4x128xf32>
    %25 = arith.subf %4, %24 : vector<4x128xf32>
    %26 = math.exp %25 : vector<4x128xf32>
    %cst_11 = arith.constant dense<0.000000e+00> : vector<4xf32>
    %27 = vector.multi_reduction <add>, %26, %cst_11 [1] : vector<4x128xf32> to vector<4xf32>
    %28 = vector.shape_cast %27 : vector<4xf32> to vector<4x1xf32>
    %29 = tpu.reciprocal %28 {approx = true} : vector<4x1xf32> -> vector<4x1xf32>
    %30 = arith.mulf %28, %29 : vector<4x1xf32>
    %cst_12 = arith.constant 2.000000e+00 : f32
    %31 = vector.broadcast %cst_12 : f32 to vector<4x1xf32>
    %32 = arith.subf %31, %30 : vector<4x1xf32>
    %33 = arith.mulf %29, %32 : vector<4x1xf32>
    %34 = arith.mulf %28, %33 : vector<4x1xf32>
    %cst_13 = arith.constant 2.000000e+00 : f32
    %35 = vector.broadcast %cst_13 : f32 to vector<4x1xf32>
    %36 = arith.subf %35, %34 : vector<4x1xf32>
    %37 = arith.mulf %33, %36 : vector<4x1xf32>
    %38 = vector.broadcast %37 : vector<4x1xf32> to vector<4x128xf32>
    %39 = arith.mulf %26, %38 : vector<4x128xf32>
    %40 = tpu.concatenate %3, %39, %21 in 1 : vector<4x128xf32>, vector<4x128xf32>, vector<4x512xf32> -> vector<4x768xf32>
    %c0_14 = arith.constant 0 : index
    %c0_15 = arith.constant 0 : index
    %41 = vector.load %arg4[%c0_14, %c0_15] : memref<4x768xf32, #tpu.memory_space<vmem>>, vector<4x768xf32>
    tpu.vector_store %arg4[%c0_14, %c0_15], %40 {strides = array<i32>} : memref<4x768xf32, #tpu.memory_space<vmem>>, vector<4x768xf32>,
    return
  }
}

</mosaic_0001>

<llo_original>
// kernel: tpu_custom_call.1
$region0: #{tpu_custom_call.1}
  #allocation0 [shape = 'u32[]', space=smem, size = 0x4, offset = 0x4, fixed_abs, tag = 'smem constant byte address 0x4 - core index']
  #allocation1 [shape = 'u32[144,128]{1,0:T(1,128)}', space=vmem, size = 0x12000, scoped, tag = 'internal scratch']
  %s0 = inlined_call_operand.hbm [shape: f32[4,11], index: 0, kind: input, shape index: {}]
  %s1 = inlined_call_operand.hbm [shape: f32[11,512], index: 1, kind: input, shape index: {}]
  %s2 = inlined_call_operand.hbm [shape: f32[128,512], index: 2, kind: input, shape index: {}]
  %s3 = inlined_call_operand.vmem [shape: f32[1,512], index: 3, kind: input, shape index: {}]
  %s4 = inlined_call_operand.hbm [shape: f32[4,768], index: 4, kind: output, shape index: {}]
  %s5 = sld [smem:[#allocation0]]
  $region38: #{tpu_custom_call.1} parent=0
    _
  %s7 = ssub.s32 1, %s5
  %s8 = scalar_select 0, %s7, %s5
  $region1: #{tpu_custom_call.1} parent=0
    #allocation2 [shape = 'u8[2048]{0}', space=vmem, size = 0x800, scoped, tag = 'input window, operand 0, single buffered']
    #allocation3 [shape = 's32[1]{0}', space=sflag, size = 0x4, scoped, tag = 'scoped memory for tpu_custom_call.1']
    #allocation4 [shape = 's32[1]{0}', space=sflag, size = 0x4, scoped, tag = 'scoped memory for tpu_custom_call.1']
    #allocation5 [shape = 'u8[32768]{0}', space=vmem, size = 0x8000, scoped, tag = 'input window, operand 1, single buffered']
    #allocation6 [shape = 's32[1]{0}', space=sflag, size = 0x4, scoped, tag = 'scoped memory for tpu_custom_call.1']
    #allocation7 [shape = 'u8[262144]{0}', space=vmem, size = 0x40000, scoped, tag = 'input window, operand 2, single buffered']
    #allocation8 [shape = 'u8[12288]{0}', space=vmem, size = 0x3000, scoped, tag = 'output window, operand 0, single buffered']
    %9 = vsyncpa [#allocation3], 0
    %10 = vsyncpa [#allocation6], 0
    %11 = vsyncpa [#allocation4], 0
    // Predicated region
    $region2: #{tpu_custom_call.1} parent=1 // pred_check
      _
    $region3: #{tpu_custom_call.1} parent=1 // pred_check_branch
      %13 = sbr.rel (0) target = $region5
    $region4: #{tpu_custom_call.1} parent=1 // pred_region
      %s15 = ssub.s32 64, 64
      %16 = vsyncadd [#allocation3], %s15
      %s18 = sshll.u32 [#allocation2], 4
      %s19 = int_to_ptr.vmem [resolvable:$true] %s18
      %21 = dma.hbm_to_vmem [thread:$0]  %s0, 64, %s19, [#allocation3]
    $region5: #{tpu_custom_call.1} parent=1 // pred_fallthru
      _
    // Predicated region
    $region6: #{tpu_custom_call.1} parent=1 // pred_check
      _
    $region7: #{tpu_custom_call.1} parent=1 // pred_check_branch
      %23 = sbr.rel (0) target = $region9
    $region8: #{tpu_custom_call.1} parent=1 // pred_region
      %s25 = ssub.s32 1024, 1024
      %26 = vsyncadd [#allocation6], %s25
      %s27 = sshll.u32 [#allocation5], 4
      %s28 = int_to_ptr.vmem [resolvable:$true] %s27
      %33 = dma.hbm_to_vmem [thread:$0]  %s1, 1024, %s28, [#allocation6], 512, 512, 32
    $region9: #{tpu_custom_call.1} parent=1 // pred_fallthru
      _
    // Predicated region
    $region10: #{tpu_custom_call.1} parent=1 // pred_check
      _
    $region11: #{tpu_custom_call.1} parent=1 // pred_check_branch
      %35 = sbr.rel (0) target = $region13
    $region12: #{tpu_custom_call.1} parent=1 // pred_region
      %s37 = ssub.s32 8192, 8192
      %38 = vsyncadd [#allocation6], %s37
      %s39 = sshll.u32 [#allocation7], 4
      %s40 = int_to_ptr.vmem [resolvable:$true] %s39
      %45 = dma.hbm_to_vmem [thread:$0]  %s2, 8192, %s40, [#allocation6], 512, 512, 32
    $region13: #{tpu_custom_call.1} parent=1 // pred_fallthru
      _
    // Predicated region
    $region14: #{tpu_custom_call.1} parent=1 // pred_check
      _
    $region15: #{tpu_custom_call.1} parent=1 // pred_check_branch
      %47 = sbr.rel (0) target = $region17
    $region16: #{tpu_custom_call.1} parent=1 // pred_region
      _
    $region17: #{tpu_custom_call.1} parent=1 // pred_fallthru
      _
    // Predicated region
    $region18: #{tpu_custom_call.1} parent=1 // pred_check
      _
    $region19: #{tpu_custom_call.1} parent=1 // pred_check_branch
      %49 = sbr.rel (0) target = $region21
    $region20: #{tpu_custom_call.1} parent=1 // pred_region
      %50 = dma.done [#allocation3], 64
    $region21: #{tpu_custom_call.1} parent=1 // pred_fallthru
      _
    // Predicated region
    $region22: #{tpu_custom_call.1} parent=1 // pred_check
      _
    $region23: #{tpu_custom_call.1} parent=1 // pred_check_branch
      %52 = sbr.rel (0) target = $region25
    $region24: #{tpu_custom_call.1} parent=1 // pred_region
      %53 = dma.done [#allocation6], 1024
    $region25: #{tpu_custom_call.1} parent=1 // pred_fallthru
      _
    // Predicated region
    $region26: #{tpu_custom_call.1} parent=1 // pred_check
      _
    $region27: #{tpu_custom_call.1} parent=1 // pred_check_branch
      %55 = sbr.rel (0) target = $region29
    $region28: #{tpu_custom_call.1} parent=1 // pred_region
      %56 = dma.done [#allocation6], 8192
    $region29: #{tpu_custom_call.1} parent=1 // pred_fallthru
      _
    %v57 = vld [vmem:[#allocation2] sm:$0xf]
    %v58 = vld [vmem:[#allocation5] sm:$0xff]
    %v59 = vld [vmem:[#allocation5 + $0x8] sm:$0xff]
    %v60 = vld [vmem:[#allocation5 + $0x10] sm:$0xff]
    %v61 = vld [vmem:[#allocation5 + $0x18] sm:$0xff]
    %v62 = vld [vmem:[#allocation5 + $0x20] sm:$0x7]
    %v63 = vld [vmem:[#allocation5 + $0x28] sm:$0x7]
    %v64 = vld [vmem:[#allocation5 + $0x30] sm:$0x7]
    %v65 = vld [vmem:[#allocation5 + $0x38] sm:$0x7]
    %vm66 = vcmask 89088
    %v68 = vsel %vm66, %v57, 0
    %vm70 = vcmask 1042432
    %v72 = vsel %vm70, %v62, 0
    %v75 = vsel %vm70, %v63, 0
    %v78 = vsel %vm70, %v64, 0
    %v81 = vsel %vm70, %v65, 0
    %83 = vmatprep.subr.mxu0 %v59
    %84 = vmatpush1.msra.mxu0 %v58
    %85 = vmatprep.subr.mxu0 %v75
    %86 = vmatpush1.msra.mxu0 %v72
    %87 = vmatprep.subr.mxu0 0.0
    %88 = vmatpush1.msra.mxu0 0.0
    %89 = vmatprep.subr.mxu0 0.0
    %90 = vmatpush1.msra.mxu0 0.0
    %91 = vmatprep.subr.mxu0 0.0
    %92 = vmatpush1.msra.mxu0 0.0
    %93 = vmatprep.subr.mxu0 0.0
    %94 = vmatpush1.msra.mxu0 0.0
    %95 = vmatprep.subr.mxu0 0.0
    %96 = vmatpush1.msra.mxu0 0.0
    %97 = vmatprep.subr.mxu0 0.0
    %98 = vmatpush1.msra.mxu0 0.0
    %99 = vmatprep.subr.mxu0 0.0
    %100 = vmatpush1.msra.mxu0 0.0
    %101 = vmatprep.subr.mxu0 0.0
    %102 = vmatpush1.msra.mxu0 0.0
    %103 = vmatprep.subr.mxu0 0.0
    %104 = vmatpush1.msra.mxu0 0.0
    %105 = vmatprep.subr.mxu0 0.0
    %106 = vmatpush1.msra.mxu0 0.0
    %107 = vmatprep.subr.mxu0 0.0
    %108 = vmatpush1.msra.mxu0 0.0
    %109 = vmatprep.subr.mxu0 0.0
    %110 = vmatpush1.msra.mxu0 0.0
    %111 = vmatprep.subr.mxu0 0.0
    %112 = vmatpush1.msra.mxu0 0.0
    %113 = vmatprep.subr.mxu0 0.0
    %114 = vmatpush1.msra.mxu0 0.0
    %115 = vmatprep.subr.mxu0 0.0
    %116 = vmatpush1.msra.mxu0 0.0
    %117 = vmatprep.subr.mxu0 0.0
    %118 = vmatpush1.msra.mxu0 0.0
    %119 = vmatprep.subr.mxu0 0.0
    %120 = vmatpush1.msra.mxu0 0.0
    %121 = vmatprep.subr.mxu0 0.0
    %122 = vmatpush1.msra.mxu0 0.0
    %123 = vmatprep.subr.mxu0 0.0
    %124 = vmatpush1.msra.mxu0 0.0
    %125 = vmatprep.subr.mxu0 0.0
    %126 = vmatpush1.msra.mxu0 0.0
    %127 = vmatprep.subr.mxu0 0.0
    %128 = vmatpush1.msra.mxu0 0.0
    %129 = vmatprep.subr.mxu0 0.0
    %130 = vmatpush1.msra.mxu0 0.0
    %131 = vmatprep.subr.mxu0 0.0
    %132 = vmatpush1.msra.mxu0 0.0
    %133 = vmatprep.subr.mxu0 0.0
    %134 = vmatpush1.msra.mxu0 0.0
    %135 = vmatprep.subr.mxu0 0.0
    %136 = vmatpush1.msra.mxu0 0.0
    %137 = vmatprep.subr.mxu0 0.0
    %138 = vmatpush1.msra.mxu0 0.0
    %139 = vmatprep.subr.mxu0 0.0
    %140 = vmatpush1.msra.mxu0 0.0
    %141 = vmatprep.subr.mxu0 0.0
    %142 = vmatpush1.msra.mxu0 0.0
    %143 = vmatprep.subr.mxu0 0.0
    %144 = vmatpush1.msra.mxu0 0.0
    %145 = vmatprep.subr.mxu0 0.0
    %146 = vmatpush1.msra.mxu0 0.0
    %147 = vmatprep.mubr.f32.mxu0 0.0
    %148 = vmatmul.mubr.f32.gmra.mrb[0].mxu0 %v68
    %v149 = vpop.f32.mrb[0].mxu0
    %v150 = vadd.f32 0.0, %v149
    %v151 = vpop.f32.mrb[0].mxu0
    %v152 = vadd.f32 0.0, %v151
    %153 = vdwg.mxu0
    %154 = vmatprep.subr.mxu0 %v61
    %155 = vmatpush1.msra.mxu0 %v60
    %156 = vmatprep.subr.mxu0 %v81
    %157 = vmatpush1.msra.mxu0 %v78
    %158 = vmatprep.subr.mxu0 0.0
    %159 = vmatpush1.msra.mxu0 0.0
    %160 = vmatprep.subr.mxu0 0.0
    %161 = vmatpush1.msra.mxu0 0.0
    %162 = vmatprep.subr.mxu0 0.0
    %163 = vmatpush1.msra.mxu0 0.0
    %164 = vmatprep.subr.mxu0 0.0
    %165 = vmatpush1.msra.mxu0 0.0
    %166 = vmatprep.subr.mxu0 0.0
    %167 = vmatpush1.msra.mxu0 0.0
    %168 = vmatprep.subr.mxu0 0.0
    %169 = vmatpush1.msra.mxu0 0.0
    %170 = vmatprep.subr.mxu0 0.0
    %171 = vmatpush1.msra.mxu0 0.0
    %172 = vmatprep.subr.mxu0 0.0
    %173 = vmatpush1.msra.mxu0 0.0
    %174 = vmatprep.subr.mxu0 0.0
    %175 = vmatpush1.msra.mxu0 0.0
    %176 = vmatprep.subr.mxu0 0.0
    %177 = vmatpush1.msra.mxu0 0.0
    %178 = vmatprep.subr.mxu0 0.0
    %179 = vmatpush1.msra.mxu0 0.0
    %180 = vmatprep.subr.mxu0 0.0
    %181 = vmatpush1.msra.mxu0 0.0
    %182 = vmatprep.subr.mxu0 0.0
    %183 = vmatpush1.msra.mxu0 0.0
    %184 = vmatprep.subr.mxu0 0.0
    %185 = vmatpush1.msra.mxu0 0.0
    %186 = vmatprep.subr.mxu0 0.0
    %187 = vmatpush1.msra.mxu0 0.0
    %188 = vmatprep.subr.mxu0 0.0
    %189 = vmatpush1.msra.mxu0 0.0
    %190 = vmatprep.subr.mxu0 0.0
    %191 = vmatpush1.msra.mxu0 0.0
    %192 = vmatprep.subr.mxu0 0.0
    %193 = vmatpush1.msra.mxu0 0.0
    %194 = vmatprep.subr.mxu0 0.0
    %195 = vmatpush1.msra.mxu0 0.0
    %196 = vmatprep.subr.mxu0 0.0
    %197 = vmatpush1.msra.mxu0 0.0
    %198 = vmatprep.subr.mxu0 0.0
    %199 = vmatpush1.msra.mxu0 0.0
    %200 = vmatprep.subr.mxu0 0.0
    %201 = vmatpush1.msra.mxu0 0.0
    %202 = vmatprep.subr.mxu0 0.0
    %203 = vmatpush1.msra.mxu0 0.0
    %204 = vmatprep.subr.mxu0 0.0
    %205 = vmatpush1.msra.mxu0 0.0
    %206 = vmatprep.subr.mxu0 0.0
    %207 = vmatpush1.msra.mxu0 0.0
    %208 = vmatprep.subr.mxu0 0.0
    %209 = vmatpush1.msra.mxu0 0.0
    %210 = vmatprep.subr.mxu0 0.0
    %211 = vmatpush1.msra.mxu0 0.0
    %212 = vmatprep.subr.mxu0 0.0
    %213 = vmatpush1.msra.mxu0 0.0
    %214 = vmatprep.subr.mxu0 0.0
    %215 = vmatpush1.msra.mxu0 0.0
    %216 = vmatprep.subr.mxu0 0.0
    %217 = vmatpush1.msra.mxu0 0.0
    %218 = vmatprep.mubr.f32.mxu0 0.0
    %219 = vmatmul.mubr.f32.gmra.mrb[0].mxu0 %v68
    %v220 = vpop.f32.mrb[0].mxu0
    %v221 = vadd.f32 0.0, %v220
    %v222 = vpop.f32.mrb[0].mxu0
    %v223 = vadd.f32 0.0, %v222
    %224 = vdwg.mxu0
    %v225 = vmul.f32 %v221, %v223
    %v226 = vld [vmem:[#allocation7] sm:$0xff]
    %v227 = vld [vmem:[#allocation7 + $0x8] sm:$0xff]
    %v228 = vld [vmem:[#allocation7 + $0x10] sm:$0xff]
    %v229 = vld [vmem:[#allocation7 + $0x18] sm:$0xff]
    %v230 = vld [vmem:[#allocation7 + $0x20] sm:$0xff]
    %v231 = vld [vmem:[#allocation7 + $0x28] sm:$0xff]
    %v232 = vld [vmem:[#allocation7 + $0x30] sm:$0xff]
    %v233 = vld [vmem:[#allocation7 + $0x38] sm:$0xff]
    %v234 = vld [vmem:[#allocation7 + $0x40] sm:$0xff]
    %v235 = vld [vmem:[#allocation7 + $0x48] sm:$0xff]
    %v236 = vld [vmem:[#allocation7 + $0x50] sm:$0xff]
    %v237 = vld [vmem:[#allocation7 + $0x58] sm:$0xff]
    %v238 = vld [vmem:[#allocation7 + $0x60] sm:$0xff]
    %v239 = vld [vmem:[#allocation7 + $0x68] sm:$0xff]
    %v240 = vld [vmem:[#allocation7 + $0x70] sm:$0xff]
    %v241 = vld [vmem:[#allocation7 + $0x78] sm:$0xff]
    %v242 = vld [vmem:[#allocation7 + $0x80] sm:$0xff]
    %v243 = vld [vmem:[#allocation7 + $0x88] sm:$0xff]
    %v244 = vld [vmem:[#allocation7 + $0x90] sm:$0xff]
    %v245 = vld [vmem:[#allocation7 + $0x98] sm:$0xff]
    %v246 = vld [vmem:[#allocation7 + $0xa0] sm:$0xff]
    %v247 = vld [vmem:[#allocation7 + $0xa8] sm:$0xff]
    %v248 = vld [vmem:[#allocation7 + $0xb0] sm:$0xff]
    %v249 = vld [vmem:[#allocation7 + $0xb8] sm:$0xff]
    %v250 = vld [vmem:[#allocation7 + $0xc0] sm:$0xff]
    %v251 = vld [vmem:[#allocation7 + $0xc8] sm:$0xff]
    %v252 = vld [vmem:[#allocation7 + $0xd0] sm:$0xff]
    %v253 = vld [vmem:[#allocation7 + $0xd8] sm:$0xff]
    %v254 = vld [vmem:[#allocation7 + $0xe0] sm:$0xff]
    %v255 = vld [vmem:[#allocation7 + $0xe8] sm:$0xff]
    %v256 = vld [vmem:[#allocation7 + $0xf0] sm:$0xff]
    %v257 = vld [vmem:[#allocation7 + $0xf8] sm:$0xff]
    %v258 = vld [vmem:[#allocation7 + $0x100] sm:$0xff]
    %v259 = vld [vmem:[#allocation7 + $0x108] sm:$0xff]
    %v260 = vld [vmem:[#allocation7 + $0x110] sm:$0xff]
    %v261 = vld [vmem:[#allocation7 + $0x118] sm:$0xff]
    %v262 = vld [vmem:[#allocation7 + $0x120] sm:$0xff]
    %v263 = vld [vmem:[#allocation7 + $0x128] sm:$0xff]
    %v264 = vld [vmem:[#allocation7 + $0x130] sm:$0xff]
    %v265 = vld [vmem:[#allocation7 + $0x138] sm:$0xff]
    %v266 = vld [vmem:[#allocation7 + $0x140] sm:$0xff]
    %v267 = vld [vmem:[#allocation7 + $0x148] sm:$0xff]
    %v268 = vld [vmem:[#allocation7 + $0x150] sm:$0xff]
    %v269 = vld [vmem:[#allocation7 + $0x158] sm:$0xff]
    %v270 = vld [vmem:[#allocation7 + $0x160] sm:$0xff]
    %v271 = vld [vmem:[#allocation7 + $0x168] sm:$0xff]
    %v272 = vld [vmem:[#allocation7 + $0x170] sm:$0xff]
    %v273 = vld [vmem:[#allocation7 + $0x178] sm:$0xff]
    %v274 = vld [vmem:[#allocation7 + $0x180] sm:$0xff]
    %v275 = vld [vmem:[#allocation7 + $0x188] sm:$0xff]
    %v276 = vld [vmem:[#allocation7 + $0x190] sm:$0xff]
    %v277 = vld [vmem:[#allocation7 + $0x198] sm:$0xff]
    %v278 = vld [vmem:[#allocation7 + $0x1a0] sm:$0xff]
    %v279 = vld [vmem:[#allocation7 + $0x1a8] sm:$0xff]
    %v280 = vld [vmem:[#allocation7 + $0x1b0] sm:$0xff]
    %v281 = vld [vmem:[#allocation7 + $0x1b8] sm:$0xff]
    %v282 = vld [vmem:[#allocation7 + $0x1c0] sm:$0xff]
    %v283 = vld [vmem:[#allocation7 + $0x1c8] sm:$0xff]
    %v284 = vld [vmem:[#allocation7 + $0x1d0] sm:$0xff]
    %v285 = vld [vmem:[#allocation7 + $0x1d8] sm:$0xff]
    %v286 = vld [vmem:[#allocation7 + $0x1e0] sm:$0xff]
    %v287 = vld [vmem:[#allocation7 + $0x1e8] sm:$0xff]
    %v288 = vld [vmem:[#allocation7 + $0x1f0] sm:$0xff]
    %v289 = vld [vmem:[#allocation7 + $0x1f8] sm:$0xff]
    %290 = vmatprep.subr.mxu0 %v227
    %291 = vmatpush1.msra.mxu0 %v226
    %292 = vmatprep.subr.mxu0 %v231
    %293 = vmatpush1.msra.mxu0 %v230
    %294 = vmatprep.subr.mxu0 %v235
    %295 = vmatpush1.msra.mxu0 %v234
    %296 = vmatprep.subr.mxu0 %v239
    %297 = vmatpush1.msra.mxu0 %v238
    %298 = vmatprep.subr.mxu0 %v243
    %299 = vmatpush1.msra.mxu0 %v242
    %300 = vmatprep.subr.mxu0 %v247
    %301 = vmatpush1.msra.mxu0 %v246
    %302 = vmatprep.subr.mxu0 %v251
    %303 = vmatpush1.msra.mxu0 %v250
    %304 = vmatprep.subr.mxu0 %v255
    %305 = vmatpush1.msra.mxu0 %v254
    %306 = vmatprep.subr.mxu0 %v259
    %307 = vmatpush1.msra.mxu0 %v258
    %308 = vmatprep.subr.mxu0 %v263
    %309 = vmatpush1.msra.mxu0 %v262
    %310 = vmatprep.subr.mxu0 %v267
    %311 = vmatpush1.msra.mxu0 %v266
    %312 = vmatprep.subr.mxu0 %v271
    %313 = vmatpush1.msra.mxu0 %v270
    %314 = vmatprep.subr.mxu0 %v275
    %315 = vmatpush1.msra.mxu0 %v274
    %316 = vmatprep.subr.mxu0 %v279
    %317 = vmatpush1.msra.mxu0 %v278
    %318 = vmatprep.subr.mxu0 %v283
    %319 = vmatpush1.msra.mxu0 %v282
    %320 = vmatprep.subr.mxu0 %v287
    %321 = vmatpush1.msra.mxu0 %v286
    %322 = vmatprep.subr.mxu0 0.0
    %323 = vmatpush1.msra.mxu0 0.0
    %324 = vmatprep.subr.mxu0 0.0
    %325 = vmatpush1.msra.mxu0 0.0
    %326 = vmatprep.subr.mxu0 0.0
    %327 = vmatpush1.msra.mxu0 0.0
    %328 = vmatprep.subr.mxu0 0.0
    %329 = vmatpush1.msra.mxu0 0.0
    %330 = vmatprep.subr.mxu0 0.0
    %331 = vmatpush1.msra.mxu0 0.0
    %332 = vmatprep.subr.mxu0 0.0
    %333 = vmatpush1.msra.mxu0 0.0
    %334 = vmatprep.subr.mxu0 0.0
    %335 = vmatpush1.msra.mxu0 0.0
    %336 = vmatprep.subr.mxu0 0.0
    %337 = vmatpush1.msra.mxu0 0.0
    %338 = vmatprep.subr.mxu0 0.0
    %339 = vmatpush1.msra.mxu0 0.0
    %340 = vmatprep.subr.mxu0 0.0
    %341 = vmatpush1.msra.mxu0 0.0
    %342 = vmatprep.subr.mxu0 0.0
    %343 = vmatpush1.msra.mxu0 0.0
    %344 = vmatprep.subr.mxu0 0.0
    %345 = vmatpush1.msra.mxu0 0.0
    %346 = vmatprep.subr.mxu0 0.0
    %347 = vmatpush1.msra.mxu0 0.0
    %348 = vmatprep.subr.mxu0 0.0
    %349 = vmatpush1.msra.mxu0 0.0
    %350 = vmatprep.subr.mxu0 0.0
    %351 = vmatpush1.msra.mxu0 0.0
    %352 = vmatprep.subr.mxu0 0.0
    %353 = vmatpush1.msra.mxu0 0.0
    %354 = vmatprep.mubr.f32.mxu0 0.0
    %355 = vmatmul.mubr.f32.gmra.mrb[0].mxu0 %v225
    %v356 = vpop.f32.mrb[0].mxu0
    %v357 = vadd.f32 0.0, %v356
    %v358 = vpop.f32.mrb[0].mxu0
    %v359 = vadd.f32 0.0, %v358
    %360 = vdwg.mxu0
    %361 = vmatprep.subr.mxu0 %v229
    %362 = vmatpush1.msra.mxu0 %v228
    %363 = vmatprep.subr.mxu0 %v233
    %364 = vmatpush1.msra.mxu0 %v232
    %365 = vmatprep.subr.mxu0 %v237
    %366 = vmatpush1.msra.mxu0 %v236
    %367 = vmatprep.subr.mxu0 %v241
    %368 = vmatpush1.msra.mxu0 %v240
    %369 = vmatprep.subr.mxu0 %v245
    %370 = vmatpush1.msra.mxu0 %v244
    %371 = vmatprep.subr.mxu0 %v249
    %372 = vmatpush1.msra.mxu0 %v248
    %373 = vmatprep.subr.mxu0 %v253
    %374 = vmatpush1.msra.mxu0 %v252
    %375 = vmatprep.subr.mxu0 %v257
    %376 = vmatpush1.msra.mxu0 %v256
    %377 = vmatprep.subr.mxu0 %v261
    %378 = vmatpush1.msra.mxu0 %v260
    %379 = vmatprep.subr.mxu0 %v265
    %380 = vmatpush1.msra.mxu0 %v264
    %381 = vmatprep.subr.mxu0 %v269
    %382 = vmatpush1.msra.mxu0 %v268
    %383 = vmatprep.subr.mxu0 %v273
    %384 = vmatpush1.msra.mxu0 %v272
    %385 = vmatprep.subr.mxu0 %v277
    %386 = vmatpush1.msra.mxu0 %v276
    %387 = vmatprep.subr.mxu0 %v281
    %388 = vmatpush1.msra.mxu0 %v280
    %389 = vmatprep.subr.mxu0 %v285
    %390 = vmatpush1.msra.mxu0 %v284
    %391 = vmatprep.subr.mxu0 %v289
    %392 = vmatpush1.msra.mxu0 %v288
    %393 = vmatprep.subr.mxu0 0.0
    %394 = vmatpush1.msra.mxu0 0.0
    %395 = vmatprep.subr.mxu0 0.0
    %396 = vmatpush1.msra.mxu0 0.0
    %397 = vmatprep.subr.mxu0 0.0
    %398 = vmatpush1.msra.mxu0 0.0
    %399 = vmatprep.subr.mxu0 0.0
    %400 = vmatpush1.msra.mxu0 0.0
    %401 = vmatprep.subr.mxu0 0.0
    %402 = vmatpush1.msra.mxu0 0.0
    %403 = vmatprep.subr.mxu0 0.0
    %404 = vmatpush1.msra.mxu0 0.0
    %405 = vmatprep.subr.mxu0 0.0
    %406 = vmatpush1.msra.mxu0 0.0
    %407 = vmatprep.subr.mxu0 0.0
    %408 = vmatpush1.msra.mxu0 0.0
    %409 = vmatprep.subr.mxu0 0.0
    %410 = vmatpush1.msra.mxu0 0.0
    %411 = vmatprep.subr.mxu0 0.0
    %412 = vmatpush1.msra.mxu0 0.0
    %413 = vmatprep.subr.mxu0 0.0
    %414 = vmatpush1.msra.mxu0 0.0
    %415 = vmatprep.subr.mxu0 0.0
    %416 = vmatpush1.msra.mxu0 0.0
    %417 = vmatprep.subr.mxu0 0.0
    %418 = vmatpush1.msra.mxu0 0.0
    %419 = vmatprep.subr.mxu0 0.0
    %420 = vmatpush1.msra.mxu0 0.0
    %421 = vmatprep.subr.mxu0 0.0
    %422 = vmatpush1.msra.mxu0 0.0
    %423 = vmatprep.subr.mxu0 0.0
    %424 = vmatpush1.msra.mxu0 0.0
    %425 = vmatprep.mubr.f32.mxu0 0.0
    %426 = vmatmul.mubr.f32.gmra.mrb[0].mxu0 %v225
    %v427 = vpop.f32.mrb[0].mxu0
    %v428 = vadd.f32 0.0, %v427
    %v429 = vpop.f32.mrb[0].mxu0
    %v430 = vadd.f32 0.0, %v429
    %431 = vdwg.mxu0
    %v432 = vxor.u32 %v357, 2147483648
    %v433 = vxor.u32 %v359, 2147483648
    %v434 = vxor.u32 %v428, 2147483648
    %v435 = vxor.u32 %v430, 2147483648
    %v436 = vmul.f32 %v432, 1.442695
    %v437 = vpow.pop %v436
    %v438 = vmul.f32 %v433, 1.442695
    %v439 = vpow.pop %v438
    %v440 = vmul.f32 %v434, 1.442695
    %v441 = vpow.pop %v440
    %v442 = vmul.f32 %v435, 1.442695
    %v443 = vpow.pop %v442
    %v444 = vadd.f32 %v437, 1.0
    %v445 = vadd.f32 %v439, 1.0
    %v446 = vadd.f32 %v441, 1.0
    %v447 = vadd.f32 %v443, 1.0
    %v448 = vrcp.pop %v444
    %v449 = vmul.f32 1.0, %v448
    %v450 = vrcp.pop %v445
    %v451 = vmul.f32 1.0, %v450
    %v452 = vrcp.pop %v446
    %v453 = vmul.f32 1.0, %v452
    %v454 = vrcp.pop %v447
    %v455 = vmul.f32 1.0, %v454
    %v456 = vld [vmem:[%s3] sm:$0xf]
    %v457 = vsub.f32 1.0, %v456
    %v459 = vlaneseq
    %v460 = vshrl.u32 %v459, 7
    %v461 = vsub.s32 0, %v460
    %v462 = vrot.slane %v457, %v461
    %v463 = vlaneseq
    %v464 = vshrl.u32 %v463, 7
    %v465 = vsub.s32 1, %v464
    %v466 = vrot.slane %v457, %v465
    %v467 = vlaneseq
    %v468 = vshrl.u32 %v467, 7
    %v469 = vsub.s32 2, %v468
    %v470 = vrot.slane %v457, %v469
    %v471 = vlaneseq
    %v472 = vshrl.u32 %v471, 7
    %v473 = vsub.s32 3, %v472
    %v474 = vrot.slane %v457, %v473
    %v479 = vmul.f32 %v449, %v462
    %v480 = vmul.f32 %v451, %v466
    %v481 = vmul.f32 %v453, %v470
    %v482 = vmul.f32 %v455, %v474
    %v484 = vlaneseq
    %v485 = vshrl.u32 %v484, 7
    %v486 = vsub.s32 0, %v485
    %v487 = vrot.slane %v456, %v486
    %v488 = vlaneseq
    %v489 = vshrl.u32 %v488, 7
    %v490 = vsub.s32 1, %v489
    %v491 = vrot.slane %v456, %v490
    %v492 = vlaneseq
    %v493 = vshrl.u32 %v492, 7
    %v494 = vsub.s32 2, %v493
    %v495 = vrot.slane %v456, %v494
    %v496 = vlaneseq
    %v497 = vshrl.u32 %v496, 7
    %v498 = vsub.s32 3, %v497
    %v499 = vrot.slane %v456, %v498
    %v504 = vadd.f32 %v479, %v487
    %v505 = vadd.f32 %v480, %v491
    %v506 = vadd.f32 %v481, %v495
    %v507 = vadd.f32 %v482, %v499
    %vm508 = vcmask 1043456
    %v509 = vsel %vm508, %v152, -inf
    %510 = vmax.xlane.f32.xlu0 %v509
    %v511 = vpop.xlane.xlu0 %510
    %v512 = vsub.f32 %v152, %v511
    %v513 = vmul.f32 %v512, 1.442695
    %v514 = vpow.pop %v513
    %v515 = vsel %vm508, %v514, 0.0
    %516 = vadd.xlane.f32.xlu0 %v515
    %v517 = vpop.xlane.xlu0 %516
    %v518 = vrcp.pop %v517
    %v519 = vmul.f32 %v517, %v518
    %v520 = vsub.f32 2.0, %v519
    %v521 = vmul.f32 %v518, %v520
    %v522 = vmul.f32 %v517, %v521
    %v523 = vsub.f32 2.0, %v522
    %v524 = vmul.f32 %v521, %v523
    %v525 = vmul.f32 %v514, %v524
    %v532 = vcombine.low %v150, %v525
    %v533 = vcombine.low %v504, %v505
    %v534 = vcombine.low %v506, %v507
    %538 = vst [vmem:[#allocation8] sm:$0xff] %v532
    %539 = vst [vmem:[#allocation8 + $0x8] sm:$0xff] %v533
    %540 = vst [vmem:[#allocation8 + $0x10] sm:$0xff] %v534
    // Predicated region
    $region30: #{tpu_custom_call.1} parent=1 // pred_check
      _
    $region31: #{tpu_custom_call.1} parent=1 // pred_check_branch
      %542 = sbr.rel (0) target = $region33
    $region32: #{tpu_custom_call.1} parent=1 // pred_region
      %s544 = ssub.s32 384, 384
      %545 = vsyncadd [#allocation4], %s544
      %s547 = sshll.u32 [#allocation8], 4
      %s548 = int_to_ptr.vmem [resolvable:$true] %s547
      %550 = dma.vmem_to_hbm [thread:$0]  %s548, 384, %s4, [#allocation4]
    $region33: #{tpu_custom_call.1} parent=1 // pred_fallthru
      _
    // Predicated region
    $region34: #{tpu_custom_call.1} parent=1 // pred_check
      _
    $region35: #{tpu_custom_call.1} parent=1 // pred_check_branch
      %552 = sbr.rel (0) target = $region37
    $region36: #{tpu_custom_call.1} parent=1 // pred_region
      %553 = dma.done [#allocation4], 384
    $region37: #{tpu_custom_call.1} parent=1 // pred_fallthru
      _
    %554 = vsyncpa [#allocation3], 1
    %555 = vsyncpa [#allocation6], 1
    %556 = vsyncpa [#allocation4], 1

</llo_original>
